<compile_context>
chip_gen: v7x
topology: tpu7x:2x2x1
jax: 0.10.0
libtpu: 0.0.40
codegen_flags: <defaults>
</compile_context>

<pallas_src>
import functools

import jax
import jax.numpy as jnp
from jax.experimental import pallas as pl
from jax.experimental.pallas import tpu as pltpu

_BN_EPS = 1e-5


# ----------------------------------------------------------------------------------
# Pallas kernel: B images per grid step, everything in (C, H*W) lane-dense layout.
# ----------------------------------------------------------------------------------
def _bottleneck_kernel(mask_ref, x_ref, w1_ref, b1_ref, w2_ref, b2_ref, o_ref,
                       *, add, W, fuse_taps):
    B, _, HW = x_ref.shape
    c_mid = w1_ref.shape[0]
    c2 = w2_ref.shape[0]

    w1 = w1_ref[...]                       # (c_, c1)   bf16, BN scale folded in
    w2 = w2_ref[...]                       # (c2, 9*c_) bf16, BN scale folded in
    b1 = b1_ref[...]                       # (c_, 1)    f32
    b2 = b2_ref[...]                       # (c2, 1)    f32
    not_first_col = mask_ref[0:1, :]       # (1, HW) bf16: 0 at column 0, else 1
    not_last_col = mask_ref[1:2, :]        # (1, HW) bf16: 0 at column W-1, else 1

    def shift(a, o):
        # out[:, j] = a[:, j + o] if 0 <= j + o < HW else 0   (o is a static int)
        if o == 0:
            return a
        z = jnp.zeros((a.shape[0], abs(o)), a.dtype)
        if o > 0:
            return jnp.concatenate([a[:, o:], z], axis=1)
        return jnp.concatenate([z, a[:, :HW + o]], axis=1)

    # Statically unrolled over the images in this block (B is a compile-time int).
    for b in range(B):
        x = x_ref[b]                                                       # (c1, HW) bf16

        # --- cv1: 1x1 conv (BN folded) + bias + SiLU (EUP path) ---
        y1 = jnp.dot(w1, x, preferred_element_type=jnp.float32)            # (c_, HW) f32
        y1 = y1 + b1
        y1 = y1 * pl.reciprocal(1.0 + jnp.exp(-y1), approx=True)           # SiLU
        y1_b = y1.astype(jnp.bfloat16)

        # Pre-masked copies: the garbage seen by a dw=+1 tap in output column W-1
        # always originates from the source's column 0 (and symmetrically for dw=-1),
        # so zeroing that source column once replaces 6 per-tap selects.
        y1_zf = y1_b * not_first_col        # used by the three dw = +1 taps
        y1_zl = y1_b * not_last_col         # used by the three dw = -1 taps

        taps = []
        for dh in (-1, 0, 1):
            for dw in (-1, 0, 1):
                src = y1_b if dw == 0 else (y1_zf if dw == 1 else y1_zl)
                taps.append(shift(src, dh * W + dw))                       # bf16

        # --- cv2: 3x3 conv (pad=1) ---
        if fuse_taps:
            patches = jnp.concatenate(taps, axis=0)                        # (9*c_, HW)
            y2 = jnp.dot(w2, patches, preferred_element_type=jnp.float32)  # (c2, HW)
        else:
            # Per-tap accumulating matmuls: no (9*c_, HW) patches buffer (v7x VMEM).
            y2 = jnp.zeros((c2, HW), jnp.float32)
            for k, t in enumerate(taps):
                y2 = y2 + jnp.dot(w2[:, k * c_mid:(k + 1) * c_mid], t,
                                  preferred_element_type=jnp.float32)

        y2 = y2 + b2
        y2 = y2 * pl.reciprocal(1.0 + jnp.exp(-y2), approx=True)           # SiLU
        if add:
            y2 = y2 + x.astype(jnp.float32)
        o_ref[b] = y2.astype(o_ref.dtype)


# ----------------------------------------------------------------------------------
# Wrapper helpers.
# ----------------------------------------------------------------------------------
def _pick_batch_block(N, per_image_bytes, budget_bytes=4 << 20):
    """Largest divisor B of N keeping grid length >= 2 and blocks within budget."""
    if N <= 1:
        return 1
    max_b = max(1, budget_bytes // max(1, per_image_bytes))
    best = 1
    for b in range(1, N + 1):
        if b > max_b:
            break
        if N % b == 0 and N // b >= 2:
            best = b
    return best


def bottleneck_pallas(x_nchw, folded_params, *, shortcut=True,
                      batch_block=None, force_accumulate=False):
    w1, b1, w2, b2 = folded_params
    N, c1, H, W = x_nchw.shape
    c_mid = w1.shape[0]
    c2 = w2.shape[0]
    add = bool(shortcut and c1 == c2)
    HW = H * W

    # bf16 activation stream at the HBM boundary (only free reshapes otherwise).
    x_flat = x_nchw.reshape(N, c1, HW).astype(jnp.bfloat16)

    # Column-boundary masks, built once and reused for every image / grid step.
    col = jnp.arange(HW, dtype=jnp.int32) % W
    masks = jnp.stack([(col > 0), (col < W - 1)]).astype(jnp.bfloat16)      # (2, HW)

    # Rough live-bytes per image inside the kernel body (bf16 I/O, f32 acc, bf16 taps).
    per_image_bytes = HW * (2 * (c1 + c2) + c_mid * (4 + 6 + 18) + 4 * c2)
    if batch_block is None:
        batch_block = _pick_batch_block(N, per_image_bytes)
    B = int(batch_block)

    # Pad batch so B divides it (no-op when B was picked as a divisor of N).
    pad = (-N) % B
    if pad:
        x_flat = jnp.concatenate(
            [x_flat, jnp.zeros((pad, c1, HW), x_flat.dtype)], axis=0)
    n_blocks = (N + pad) // B

    # Fused im2col matmul for tiny c_, per-tap accumulating matmuls otherwise.
    fuse_taps = (not force_accumulate) and (9 * c_mid <= 1024)

    # Explicit scoped-VMEM budget: double-buffered bf16 in/out blocks + weights
    # + per-image intermediates, with 2x headroom, clamped to a safe range.
    vmem_est = (2 * 2 * B * HW * 2 * (c1 + c2)
                + B * per_image_bytes
                + 2 * (c_mid * c1 + 9 * c_mid * c2) + 4 * (c_mid + c2))
    vmem_limit = int(min(max(32 << 20, 2 * vmem_est), 64 << 20))

    kern = functools.partial(_bottleneck_kernel, add=add, W=W, fuse_taps=fuse_taps)
    out = pl.pallas_call(
        kern,
        out_shape=jax.ShapeDtypeStruct((N + pad, c2, HW), jnp.bfloat16),
        grid_spec=pltpu.PrefetchScalarGridSpec(
            num_scalar_prefetch=0,
            grid=(n_blocks,),
            in_specs=[
                pl.BlockSpec(masks.shape, lambda n: (0, 0)),
                pl.BlockSpec((B, c1, HW), lambda n: (n, 0, 0)),
                pl.BlockSpec(w1.shape, lambda n: (0, 0)),
                pl.BlockSpec(b1.shape, lambda n: (0, 0)),
                pl.BlockSpec(w2.shape, lambda n: (0, 0)),
                pl.BlockSpec(b2.shape, lambda n: (0, 0)),
            ],
            out_specs=pl.BlockSpec((B, c2, HW), lambda n: (n, 0, 0)),
        ),
        compiler_params=pltpu.CompilerParams(
            dimension_semantics=("parallel",),
            vmem_limit_bytes=vmem_limit),
    )(masks, x_flat, w1, b1, w2, b2)

    if pad:
        out = out[:N]
    return out.reshape(N, c2, H, W)


# ----------------------------------------------------------------------------------
# Deterministic parameter initialization (PyTorch layouts), then fold BN into weights.
# ----------------------------------------------------------------------------------
def init_raw_params(key, c1, c2, e=0.5):
    c_ = int(c2 * e)
    ks = jax.random.split(key, 10)
    return {
        # cv1: Conv2d(c1, c_, 1, bias=False) weight (c_, c1, 1, 1)
        "w1": jax.random.normal(ks[0], (c_, c1, 1, 1), jnp.float32) * 0.2,
        "g1": jax.random.uniform(ks[1], (c_,), jnp.float32, 0.5, 1.5),
        "be1": jax.random.normal(ks[2], (c_,), jnp.float32) * 0.1,
        "m1": jax.random.normal(ks[3], (c_,), jnp.float32) * 0.1,
        "v1": jax.random.uniform(ks[4], (c_,), jnp.float32, 0.5, 1.5),
        # cv2: Conv2d(c_, c2, 3, padding=1, bias=False) weight (c2, c_, 3, 3)
        "w2": jax.random.normal(ks[5], (c2, c_, 3, 3), jnp.float32) * 0.1,
        "g2": jax.random.uniform(ks[6], (c2,), jnp.float32, 0.5, 1.5),
        "be2": jax.random.normal(ks[7], (c2,), jnp.float32) * 0.1,
        "m2": jax.random.normal(ks[8], (c2,), jnp.float32) * 0.1,
        "v2": jax.random.uniform(ks[9], (c2,), jnp.float32, 0.5, 1.5),
    }


def fold_params(raw):
    # BN(conv(x)) == (scale-folded conv)(x) + bias   (inference-mode running stats)
    s1 = raw["g1"] / jnp.sqrt(raw["v1"] + _BN_EPS)                     # (c_,)
    b1 = raw["be1"] - raw["m1"] * s1
    w1 = raw["w1"][:, :, 0, 0] * s1[:, None]                           # (c_, c1)

    s2 = raw["g2"] / jnp.sqrt(raw["v2"] + _BN_EPS)                     # (c2,)
    b2 = raw["be2"] - raw["m2"] * s2
    c2, c_, _, _ = raw["w2"].shape
    # (c2, c_, 3, 3) -> (c2, 3, 3, c_) -> (c2, 9*c_); row order matches the tap order
    # (dh outer, dw inner, channel fastest) used in the kernel's im2col.
    w2 = jnp.transpose(raw["w2"], (0, 2, 3, 1)).reshape(c2, 9 * c_) * s2[:, None]

    return (w1.astype(jnp.bfloat16),
            b1.reshape(c_, 1).astype(jnp.float32),
            w2.astype(jnp.bfloat16),
            b2.reshape(c2, 1).astype(jnp.float32))


# ----------------------------------------------------------------------------------
# Pure-JAX reference (lax conv, f32) for a correctness sanity check.
# ----------------------------------------------------------------------------------
def bottleneck_reference(x_nchw, raw, *, shortcut=True):
    x = jnp.transpose(x_nchw, (0, 2, 3, 1))
    c1 = x.shape[-1]
    c2 = raw["w2"].shape[0]
    add = bool(shortcut and c1 == c2)

    def conv_bn_silu(inp, w_t, g, be, m, v, pad):
        w = jnp.transpose(w_t, (2, 3, 1, 0))                  # OIHW -> HWIO
        y = jax.lax.conv_general_dilated(
            inp, w, (1, 1), ((pad, pad), (pad, pad)),
            dimension_numbers=("NHWC", "HWIO", "NHWC"))
        y = (y - m) / jnp.sqrt(v + _BN_EPS) * g + be
        return y * jax.nn.sigmoid(y)

    y1 = conv_bn_silu(x, raw["w1"], raw["g1"], raw["be1"], raw["m1"], raw["v1"], 0)
    y2 = conv_bn_silu(y1, raw["w2"], raw["g2"], raw["be2"], raw["m2"], raw["v2"], 1)
    if add:
        y2 = y2 + x
    return jnp.transpose(y2, (0, 3, 1, 2))


if __name__ == "__main__":
    c1 = c2 = 16
    N, H, W = 4, 16, 16          # N=4 -> 2 images per grid step, grid length 2

    key = jax.random.PRNGKey(0)
    kx, kp = jax.random.split(key)
    x = jax.random.normal(kx, (N, c1, H, W), jnp.float32)     # NCHW like PyTorch

    raw = init_raw_params(kp, c1, c2, e=0.5)
    folded = fold_params(raw)

    out = jax.block_until_ready(bottleneck_pallas(x, folded, shortcut=True))
    ref = jax.block_until_ready(bottleneck_reference(x, raw, shortcut=True))

    assert out.shape == (N, c2, H, W)
    assert out.dtype == jnp.bfloat16
    max_err = float(jnp.max(jnp.abs(out.astype(jnp.float32) - ref)))
    # bf16 activation I/O + bf16 matmul inputs + approximate reciprocal in SiLU.
    assert max_err < 2e-1, f"max abs err {max_err}"

    # Also exercise the per-tap accumulating cv2 path (used for large c_ / v7x VMEM).
    out_acc = jax.block_until_ready(
        bottleneck_pallas(x, folded, shortcut=True, force_accumulate=True))
    acc_diff = float(jnp.max(jnp.abs(out_acc.astype(jnp.float32)
                                     - out.astype(jnp.float32))))
    assert acc_diff < 2e-2, f"fused vs accumulating mismatch {acc_diff}"

    print("KERNEL_OK")
</pallas_src>

<mosaic_0001>
module attributes {stable_mosaic.version = 11 : i64} {
  func.func @_bottleneck_kernel(%arg0: i32, %arg1: memref<2x256xbf16, #tpu.memory_space<vmem>>, %arg2: memref<2x16x256xbf16, #tpu.memory_space<vmem>>, %arg3: memref<8x16xbf16, #tpu.memory_space<vmem>>, %arg4: memref<8x1xf32, #tpu.memory_space<vmem>>, %arg5: memref<16x72xbf16, #tpu.memory_space<vmem>>, %arg6: memref<16x1xf32, #tpu.memory_space<vmem>>, %arg7: memref<2x16x256xbf16, #tpu.memory_space<vmem>>) attributes {dimension_semantics = [#tpu.dimension_semantics<parallel>], iteration_bounds = array<i64: 2>, scalar_prefetch = 0 : i64, scratch_operands = 0 : i64, tpu.core_type = #tpu.core_type<tc>, window_params = [{pipeline_mode = #tpu.pipeline_mode<synchronous>, transform_indices = @transform_0, window_bounds = array<i64: 2, 256>}, {transform_indices = @transform_1, window_bounds = array<i64: 2, 16, 256>}, {pipeline_mode = #tpu.pipeline_mode<synchronous>, transform_indices = @transform_2, window_bounds = array<i64: 8, 16>}, {pipeline_mode = #tpu.pipeline_mode<synchronous>, transform_indices = @transform_3, window_bounds = array<i64: 8, 1>}, {pipeline_mode = #tpu.pipeline_mode<synchronous>, transform_indices = @transform_4, window_bounds = array<i64: 16, 72>}, {pipeline_mode = #tpu.pipeline_mode<synchronous>, transform_indices = @transform_5, window_bounds = array<i64: 16, 1>}, {transform_indices = @transform_6, window_bounds = array<i64: 2, 16, 256>}]} {
    %c0 = arith.constant 0 : index
    %c0_0 = arith.constant 0 : index
    %0 = vector.load %arg3[%c0, %c0_0] : memref<8x16xbf16, #tpu.memory_space<vmem>>, vector<8x16xbf16>
    %c0_1 = arith.constant 0 : index
    %c0_2 = arith.constant 0 : index
    %1 = vector.load %arg5[%c0_1, %c0_2] : memref<16x72xbf16, #tpu.memory_space<vmem>>, vector<16x72xbf16>
    %c0_3 = arith.constant 0 : index
    %c0_4 = arith.constant 0 : index
    %2 = vector.load %arg4[%c0_3, %c0_4] : memref<8x1xf32, #tpu.memory_space<vmem>>, vector<8x1xf32>
    %c0_5 = arith.constant 0 : index
    %c0_6 = arith.constant 0 : index
    %3 = vector.load %arg6[%c0_5, %c0_6] : memref<16x1xf32, #tpu.memory_space<vmem>>, vector<16x1xf32>
    %c0_7 = arith.constant 0 : index
    %c0_8 = arith.constant 0 : index
    %4 = vector.load %arg1[%c0_7, %c0_8] : memref<2x256xbf16, #tpu.memory_space<vmem>>, vector<1x256xbf16>
    %c1 = arith.constant 1 : index
    %c0_9 = arith.constant 0 : index
    %5 = vector.load %arg1[%c1, %c0_9] : memref<2x256xbf16, #tpu.memory_space<vmem>>, vector<1x256xbf16>
    %c0_10 = arith.constant 0 : index
    %c0_11 = arith.constant 0 : index
    %c0_12 = arith.constant 0 : index
    %6 = vector.load %arg2[%c0_10, %c0_11, %c0_12] : memref<2x16x256xbf16, #tpu.memory_space<vmem>>, vector<1x16x256xbf16>
    %7 = vector.shape_cast %6 : vector<1x16x256xbf16> to vector<16x256xbf16>
    %cst = arith.constant dense<0.000000e+00> : vector<8x256xf32>
    %8 = tpu.matmul %0, %7, %cst {dimension_numbers = #tpu.dot_dimension_numbers<[1], [0], [0], [1], [0, 0, 1, 1], [], []>} : vector<8x16xbf16>, vector<16x256xbf16>, vector<8x256xf32> -> vector<8x256xf32>
    %9 = vector.broadcast %2 : vector<8x1xf32> to vector<8x256xf32>
    %10 = arith.addf %8, %9 : vector<8x256xf32>
    %cst_13 = arith.constant 0.000000e+00 : f32
    %11 = vector.broadcast %cst_13 : f32 to vector<8x256xf32>
    %12 = arith.subf %11, %10 : vector<8x256xf32>
    %13 = math.exp %12 : vector<8x256xf32>
    %cst_14 = arith.constant 1.000000e+00 : f32
    %14 = vector.broadcast %cst_14 : f32 to vector<8x256xf32>
    %15 = arith.addf %14, %13 : vector<8x256xf32>
    %16 = tpu.reciprocal %15 {approx = true} : vector<8x256xf32> -> vector<8x256xf32>
    %17 = arith.mulf %10, %16 : vector<8x256xf32>
    %18 = arith.truncf %17 : vector<8x256xf32> to vector<8x256xbf16>
    %19 = vector.broadcast %4 : vector<1x256xbf16> to vector<8x256xbf16>
    %20 = arith.mulf %18, %19 : vector<8x256xbf16>
    %21 = vector.broadcast %5 : vector<1x256xbf16> to vector<8x256xbf16>
    %22 = arith.mulf %18, %21 : vector<8x256xbf16>
    %cst_15 = arith.constant 0.000000e+00 : bf16
    %23 = vector.broadcast %cst_15 : bf16 to vector<8x17xbf16>
    %24 = vector.extract_strided_slice %22 {offsets = [0, 0], sizes = [8, 239], strides = [1, 1]} : vector<8x256xbf16> to vector<8x239xbf16>
    %25 = tpu.concatenate %23, %24 in 1 : vector<8x17xbf16>, vector<8x239xbf16> -> vector<8x256xbf16>
    %cst_16 = arith.constant 0.000000e+00 : bf16
    %26 = vector.broadcast %cst_16 : bf16 to vector<8x16xbf16>
    %27 = vector.extract_strided_slice %18 {offsets = [0, 0], sizes = [8, 240], strides = [1, 1]} : vector<8x256xbf16> to vector<8x240xbf16>
    %28 = tpu.concatenate %26, %27 in 1 : vector<8x16xbf16>, vector<8x240xbf16> -> vector<8x256xbf16>
    %cst_17 = arith.constant 0.000000e+00 : bf16
    %29 = vector.broadcast %cst_17 : bf16 to vector<8x15xbf16>
    %30 = vector.extract_strided_slice %20 {offsets = [0, 0], sizes = [8, 241], strides = [1, 1]} : vector<8x256xbf16> to vector<8x241xbf16>
    %31 = tpu.concatenate %29, %30 in 1 : vector<8x15xbf16>, vector<8x241xbf16> -> vector<8x256xbf16>
    %cst_18 = arith.constant 0.000000e+00 : bf16
    %32 = vector.broadcast %cst_18 : bf16 to vector<8x1xbf16>
    %33 = vector.extract_strided_slice %22 {offsets = [0, 0], sizes = [8, 255], strides = [1, 1]} : vector<8x256xbf16> to vector<8x255xbf16>
    %34 = tpu.concatenate %32, %33 in 1 : vector<8x1xbf16>, vector<8x255xbf16> -> vector<8x256xbf16>
    %cst_19 = arith.constant 0.000000e+00 : bf16
    %35 = vector.broadcast %cst_19 : bf16 to vector<8x1xbf16>
    %36 = vector.extract_strided_slice %20 {offsets = [0, 1], sizes = [8, 255], strides = [1, 1]} : vector<8x256xbf16> to vector<8x255xbf16>
    %37 = tpu.concatenate %36, %35 in 1 : vector<8x255xbf16>, vector<8x1xbf16> -> vector<8x256xbf16>
    %cst_20 = arith.constant 0.000000e+00 : bf16
    %38 = vector.broadcast %cst_20 : bf16 to vector<8x15xbf16>
    %39 = vector.extract_strided_slice %22 {offsets = [0, 15], sizes = [8, 241], strides = [1, 1]} : vector<8x256xbf16> to vector<8x241xbf16>
    %40 = tpu.concatenate %39, %38 in 1 : vector<8x241xbf16>, vector<8x15xbf16> -> vector<8x256xbf16>
    %cst_21 = arith.constant 0.000000e+00 : bf16
    %41 = vector.broadcast %cst_21 : bf16 to vector<8x16xbf16>
    %42 = vector.extract_strided_slice %18 {offsets = [0, 16], sizes = [8, 240], strides = [1, 1]} : vector<8x256xbf16> to vector<8x240xbf16>
    %43 = tpu.concatenate %42, %41 in 1 : vector<8x240xbf16>, vector<8x16xbf16> -> vector<8x256xbf16>
    %cst_22 = arith.constant 0.000000e+00 : bf16
    %44 = vector.broadcast %cst_22 : bf16 to vector<8x17xbf16>
    %45 = vector.extract_strided_slice %20 {offsets = [0, 17], sizes = [8, 239], strides = [1, 1]} : vector<8x256xbf16> to vector<8x239xbf16>
    %46 = tpu.concatenate %45, %44 in 1 : vector<8x239xbf16>, vector<8x17xbf16> -> vector<8x256xbf16>
    %47 = tpu.concatenate %25, %28, %31, %34, %18, %37, %40, %43, %46 in 0 : vector<8x256xbf16>, vector<8x256xbf16>, vector<8x256xbf16>, vector<8x256xbf16>, vector<8x256xbf16>, vector<8x256xbf16>, vector<8x256xbf16>, vector<8x256xbf16>, vector<8x256xbf16> -> vector<72x256xbf16>
    %cst_23 = arith.constant dense<0.000000e+00> : vector<16x256xf32>
    %48 = tpu.matmul %1, %47, %cst_23 {dimension_numbers = #tpu.dot_dimension_numbers<[1], [0], [0], [1], [0, 0, 1, 1], [], []>} : vector<16x72xbf16>, vector<72x256xbf16>, vector<16x256xf32> -> vector<16x256xf32>
    %49 = vector.broadcast %3 : vector<16x1xf32> to vector<16x256xf32>
    %50 = arith.addf %48, %49 : vector<16x256xf32>
    %cst_24 = arith.constant 0.000000e+00 : f32
    %51 = vector.broadcast %cst_24 : f32 to vector<16x256xf32>
    %52 = arith.subf %51, %50 : vector<16x256xf32>
    %53 = math.exp %52 : vector<16x256xf32>
    %cst_25 = arith.constant 1.000000e+00 : f32
    %54 = vector.broadcast %cst_25 : f32 to vector<16x256xf32>
    %55 = arith.addf %54, %53 : vector<16x256xf32>
    %56 = tpu.reciprocal %55 {approx = true} : vector<16x256xf32> -> vector<16x256xf32>
    %57 = arith.mulf %50, %56 : vector<16x256xf32>
    %58 = arith.extf %7 : vector<16x256xbf16> to vector<16x256xf32>
    %59 = arith.addf %57, %58 : vector<16x256xf32>
    %60 = arith.truncf %59 : vector<16x256xf32> to vector<16x256xbf16>
    %c0_26 = arith.constant 0 : index
    %c0_27 = arith.constant 0 : index
    %c0_28 = arith.constant 0 : index
    %61 = vector.load %arg7[%c0_26, %c0_27, %c0_28] : memref<2x16x256xbf16, #tpu.memory_space<vmem>>, vector<1x16x256xbf16>
    %62 = vector.shape_cast %61 : vector<1x16x256xbf16> to vector<16x256xbf16>
    %63 = vector.shape_cast %60 : vector<16x256xbf16> to vector<1x16x256xbf16>
    tpu.vector_store %arg7[%c0_26, %c0_27, %c0_28], %63 {strides = array<i32>} : memref<2x16x256xbf16, #tpu.memory_space<vmem>>, vector<1x16x256xbf16>,
    %c1_29 = arith.constant 1 : index
    %c0_30 = arith.constant 0 : index
    %c0_31 = arith.constant 0 : index
    %64 = vector.load %arg2[%c1_29, %c0_30, %c0_31] : memref<2x16x256xbf16, #tpu.memory_space<vmem>>, vector<1x16x256xbf16>
    %65 = vector.shape_cast %64 : vector<1x16x256xbf16> to vector<16x256xbf16>
    %cst_32 = arith.constant dense<0.000000e+00> : vector<8x256xf32>
    %66 = tpu.matmul %0, %65, %cst_32 {dimension_numbers = #tpu.dot_dimension_numbers<[1], [0], [0], [1], [0, 0, 1, 1], [], []>} : vector<8x16xbf16>, vector<16x256xbf16>, vector<8x256xf32> -> vector<8x256xf32>
    %67 = vector.broadcast %2 : vector<8x1xf32> to vector<8x256xf32>
    %68 = arith.addf %66, %67 : vector<8x256xf32>
    %cst_33 = arith.constant 0.000000e+00 : f32
    %69 = vector.broadcast %cst_33 : f32 to vector<8x256xf32>
    %70 = arith.subf %69, %68 : vector<8x256xf32>
    %71 = math.exp %70 : vector<8x256xf32>
    %cst_34 = arith.constant 1.000000e+00 : f32
    %72 = vector.broadcast %cst_34 : f32 to vector<8x256xf32>
    %73 = arith.addf %72, %71 : vector<8x256xf32>
    %74 = tpu.reciprocal %73 {approx = true} : vector<8x256xf32> -> vector<8x256xf32>
    %75 = arith.mulf %68, %74 : vector<8x256xf32>
    %76 = arith.truncf %75 : vector<8x256xf32> to vector<8x256xbf16>
    %77 = vector.broadcast %4 : vector<1x256xbf16> to vector<8x256xbf16>
    %78 = arith.mulf %76, %77 : vector<8x256xbf16>
    %79 = vector.broadcast %5 : vector<1x256xbf16> to vector<8x256xbf16>
    %80 = arith.mulf %76, %79 : vector<8x256xbf16>
    %cst_35 = arith.constant 0.000000e+00 : bf16
    %81 = vector.broadcast %cst_35 : bf16 to vector<8x17xbf16>
    %82 = vector.extract_strided_slice %80 {offsets = [0, 0], sizes = [8, 239], strides = [1, 1]} : vector<8x256xbf16> to vector<8x239xbf16>
    %83 = tpu.concatenate %81, %82 in 1 : vector<8x17xbf16>, vector<8x239xbf16> -> vector<8x256xbf16>
    %cst_36 = arith.constant 0.000000e+00 : bf16
    %84 = vector.broadcast %cst_36 : bf16 to vector<8x16xbf16>
    %85 = vector.extract_strided_slice %76 {offsets = [0, 0], sizes = [8, 240], strides = [1, 1]} : vector<8x256xbf16> to vector<8x240xbf16>
    %86 = tpu.concatenate %84, %85 in 1 : vector<8x16xbf16>, vector<8x240xbf16> -> vector<8x256xbf16>
    %cst_37 = arith.constant 0.000000e+00 : bf16
    %87 = vector.broadcast %cst_37 : bf16 to vector<8x15xbf16>
    %88 = vector.extract_strided_slice %78 {offsets = [0, 0], sizes = [8, 241], strides = [1, 1]} : vector<8x256xbf16> to vector<8x241xbf16>
    %89 = tpu.concatenate %87, %88 in 1 : vector<8x15xbf16>, vector<8x241xbf16> -> vector<8x256xbf16>
    %cst_38 = arith.constant 0.000000e+00 : bf16
    %90 = vector.broadcast %cst_38 : bf16 to vector<8x1xbf16>
    %91 = vector.extract_strided_slice %80 {offsets = [0, 0], sizes = [8, 255], strides = [1, 1]} : vector<8x256xbf16> to vector<8x255xbf16>
    %92 = tpu.concatenate %90, %91 in 1 : vector<8x1xbf16>, vector<8x255xbf16> -> vector<8x256xbf16>
    %cst_39 = arith.constant 0.000000e+00 : bf16
    %93 = vector.broadcast %cst_39 : bf16 to vector<8x1xbf16>
    %94 = vector.extract_strided_slice %78 {offsets = [0, 1], sizes = [8, 255], strides = [1, 1]} : vector<8x256xbf16> to vector<8x255xbf16>
    %95 = tpu.concatenate %94, %93 in 1 : vector<8x255xbf16>, vector<8x1xbf16> -> vector<8x256xbf16>
    %cst_40 = arith.constant 0.000000e+00 : bf16
    %96 = vector.broadcast %cst_40 : bf16 to vector<8x15xbf16>
    %97 = vector.extract_strided_slice %80 {offsets = [0, 15], sizes = [8, 241], strides = [1, 1]} : vector<8x256xbf16> to vector<8x241xbf16>
    %98 = tpu.concatenate %97, %96 in 1 : vector<8x241xbf16>, vector<8x15xbf16> -> vector<8x256xbf16>
    %cst_41 = arith.constant 0.000000e+00 : bf16
    %99 = vector.broadcast %cst_41 : bf16 to vector<8x16xbf16>
    %100 = vector.extract_strided_slice %76 {offsets = [0, 16], sizes = [8, 240], strides = [1, 1]} : vector<8x256xbf16> to vector<8x240xbf16>
    %101 = tpu.concatenate %100, %99 in 1 : vector<8x240xbf16>, vector<8x16xbf16> -> vector<8x256xbf16>
    %cst_42 = arith.constant 0.000000e+00 : bf16
    %102 = vector.broadcast %cst_42 : bf16 to vector<8x17xbf16>
    %103 = vector.extract_strided_slice %78 {offsets = [0, 17], sizes = [8, 239], strides = [1, 1]} : vector<8x256xbf16> to vector<8x239xbf16>
    %104 = tpu.concatenate %103, %102 in 1 : vector<8x239xbf16>, vector<8x17xbf16> -> vector<8x256xbf16>
    %105 = tpu.concatenate %83, %86, %89, %92, %76, %95, %98, %101, %104 in 0 : vector<8x256xbf16>, vector<8x256xbf16>, vector<8x256xbf16>, vector<8x256xbf16>, vector<8x256xbf16>, vector<8x256xbf16>, vector<8x256xbf16>, vector<8x256xbf16>, vector<8x256xbf16> -> vector<72x256xbf16>
    %cst_43 = arith.constant dense<0.000000e+00> : vector<16x256xf32>
    %106 = tpu.matmul %1, %105, %cst_43 {dimension_numbers = #tpu.dot_dimension_numbers<[1], [0], [0], [1], [0, 0, 1, 1], [], []>} : vector<16x72xbf16>, vector<72x256xbf16>, vector<16x256xf32> -> vector<16x256xf32>
    %107 = vector.broadcast %3 : vector<16x1xf32> to vector<16x256xf32>
    %108 = arith.addf %106, %107 : vector<16x256xf32>
    %cst_44 = arith.constant 0.000000e+00 : f32
    %109 = vector.broadcast %cst_44 : f32 to vector<16x256xf32>
    %110 = arith.subf %109, %108 : vector<16x256xf32>
    %111 = math.exp %110 : vector<16x256xf32>
    %cst_45 = arith.constant 1.000000e+00 : f32
    %112 = vector.broadcast %cst_45 : f32 to vector<16x256xf32>
    %113 = arith.addf %112, %111 : vector<16x256xf32>
    %114 = tpu.reciprocal %113 {approx = true} : vector<16x256xf32> -> vector<16x256xf32>
    %115 = arith.mulf %108, %114 : vector<16x256xf32>
    %116 = arith.extf %65 : vector<16x256xbf16> to vector<16x256xf32>
    %117 = arith.addf %115, %116 : vector<16x256xf32>
    %118 = arith.truncf %117 : vector<16x256xf32> to vector<16x256xbf16>
    %c1_46 = arith.constant 1 : index
    %c0_47 = arith.constant 0 : index
    %c0_48 = arith.constant 0 : index
    %119 = vector.load %arg7[%c1_46, %c0_47, %c0_48] : memref<2x16x256xbf16, #tpu.memory_space<vmem>>, vector<1x16x256xbf16>
    %120 = vector.shape_cast %119 : vector<1x16x256xbf16> to vector<16x256xbf16>
    %121 = vector.shape_cast %118 : vector<16x256xbf16> to vector<1x16x256xbf16>
    tpu.vector_store %arg7[%c1_46, %c0_47, %c0_48], %121 {strides = array<i32>} : memref<2x16x256xbf16, #tpu.memory_space<vmem>>, vector<1x16x256xbf16>,
    return
  }
  func.func @transform_0(%arg0: i32) -> (i32, i32) {
    %c0_i32 = arith.constant 0 : i32
    %c0_i32_0 = arith.constant 0 : i32
    %c0_i32_1 = arith.constant 0 : i32
    return %c0_i32, %c0_i32_0 : i32, i32
  }
  func.func @transform_1(%arg0: i32) -> (i32, i32, i32) {
    %c0_i32 = arith.constant 0 : i32
    %c0_i32_0 = arith.constant 0 : i32
    %c0_i32_1 = arith.constant 0 : i32
    return %arg0, %c0_i32, %c0_i32_0 : i32, i32, i32
  }
  func.func @transform_2(%arg0: i32) -> (i32, i32) {
    %c0_i32 = arith.constant 0 : i32
    %c0_i32_0 = arith.constant 0 : i32
    %c0_i32_1 = arith.constant 0 : i32
    return %c0_i32, %c0_i32_0 : i32, i32
  }
  func.func @transform_3(%arg0: i32) -> (i32, i32) {
    %c0_i32 = arith.constant 0 : i32
    %c0_i32_0 = arith.constant 0 : i32
    %c0_i32_1 = arith.constant 0 : i32
    return %c0_i32, %c0_i32_0 : i32, i32
  }
  func.func @transform_4(%arg0: i32) -> (i32, i32) {
    %c0_i32 = arith.constant 0 : i32
    %c0_i32_0 = arith.constant 0 : i32
    %c0_i32_1 = arith.constant 0 : i32
    return %c0_i32, %c0_i32_0 : i32, i32
  }
  func.func @transform_5(%arg0: i32) -> (i32, i32) {
    %c0_i32 = arith.constant 0 : i32
    %c0_i32_0 = arith.constant 0 : i32
    %c0_i32_1 = arith.constant 0 : i32
    return %c0_i32, %c0_i32_0 : i32, i32
  }
  func.func @transform_6(%arg0: i32) -> (i32, i32, i32) {
    %c0_i32 = arith.constant 0 : i32
    %c0_i32_0 = arith.constant 0 : i32
    %c0_i32_1 = arith.constant 0 : i32
    return %arg0, %c0_i32, %c0_i32_0 : i32, i32, i32
  }
}

</mosaic_0001>

<llo_original>
// kernel: tpu_custom_call.1
$region0: #{tpu_custom_call.1}
  #allocation0 [shape = 'u32[]', space=smem, size = 0x4, offset = 0x4, fixed_abs, tag = 'smem constant byte address 0x4 - core index']
  #allocation1 [shape = 'u32[144,128]{1,0:T(1,128)}', space=vmem, size = 0x12000, scoped, tag = 'internal scratch']
  %s0 = inlined_call_operand.vmem [shape: bf16[2,256], index: 0, kind: input, shape index: {}]
  %s1 = inlined_call_operand.hbm [shape: bf16[4,16,256], index: 1, kind: input, shape index: {}]
  %s2 = inlined_call_operand.vmem [shape: bf16[8,16], index: 2, kind: input, shape index: {}]
  %s3 = inlined_call_operand.vmem [shape: f32[8,1], index: 3, kind: input, shape index: {}]
  %s4 = inlined_call_operand.vmem [shape: bf16[16,72], index: 4, kind: input, shape index: {}]
  %s5 = inlined_call_operand.vmem [shape: f32[16,1], index: 5, kind: input, shape index: {}]
  %s6 = inlined_call_operand.hbm [shape: bf16[4,16,256], index: 6, kind: output, shape index: {}]
  %s7 = sld [smem:[#allocation0]]
  $region61: #{tpu_custom_call.1} parent=0
    _
  %s9 = ssub.s32 1, %s7
  %s10 = scalar_select 0, %s9, %s7
  $region1: #{tpu_custom_call.1} parent=0
    #allocation2 [shape = 'u8[32768]{0}', space=vmem, size = 0x8000, scoped, tag = 'input window, operand 1']
    #allocation3 [shape = 's32[2]{0}', space=sflag, size = 0x8, scoped, tag = 'scoped memory for tpu_custom_call.1']
    #allocation4 [shape = 's32[2]{0}', space=sflag, size = 0x8, scoped, tag = 'scoped memory for tpu_custom_call.1']
    #allocation5 [shape = 'u8[32768]{0}', space=vmem, size = 0x8000, scoped, tag = 'output window, operand 0']
    %11 = vsyncpa [#allocation3], 0
    %s12 = scalar_lea.sflag [#allocation3], 1
    %13 = vsyncpa %s12, 0
    %14 = vsyncpa [#allocation4], 0
    %s15 = scalar_lea.sflag [#allocation4], 1
    %16 = vsyncpa %s15, 0
    loop: start=0, step=1, limit=4
    $region2: #{tpu_custom_call.1} parent=1 // loop_pre_header
      _
    $region3: #{tpu_custom_call.1} parent=1 // loop_header
      %s18 = sphi 0, %s22
      %p19 = scmp.ge.s32.totalorder %s18, 4
      %s26 = sphi 0, %s26
      %s28 = sphi 0, %s26
      %s29 = sphi 0, %s28
      %s43 = sphi 0, %s29
      %s49 = sphi 0, %s51
      %s52 = sphi 0, %s49
      %s53 = sphi 0, %s52
      %s69 = sphi 0, %s53
      %s73 = sphi 0, %s73
      %s75 = sphi 0, %s73
      %s76 = sphi 0, %s75
      %s90 = sphi 0, %s76
      %s94 = sphi 0, %s94
      %s96 = sphi 0, %s94
      %s97 = sphi 0, %s96
      %s111 = sphi 0, %s97
      %s115 = sphi 0, %s115
      %s117 = sphi 0, %s115
      %s118 = sphi 0, %s117
      %s132 = sphi 0, %s118
      %s136 = sphi 0, %s136
      %s138 = sphi 0, %s136
      %s139 = sphi 0, %s138
      %s153 = sphi 0, %s139
      %s159 = sphi 0, %s161
      %s162 = sphi 0, %s159
      %s163 = sphi 0, %s162
      %s179 = sphi 0, %s163
    $region4: #{tpu_custom_call.1} parent=1 // loop_header_branch
      %21 = sbr.rel (%p19) target = $region8
    $region5: #{tpu_custom_call.1} parent=1 // loop_body
      %s23 = ssub.s32 %s18, 1
      %s24 = ssub.s32 %s18, 2
      %s25 = sadd.s32 %s18, 1
      %s27 = sadd.s32 %s26, 1
      %p30 = scmp.eq.s32.totalorder %s18, 1
      %p31 = scmp.ne.s32.totalorder %s26, %s28
      %p32 = scmp.eq.s32.totalorder %s18, 0
      %p33 = por %p31, %p32
      %p34 = scmp.ne.s32.totalorder %s26, %s28
      %p35 = scmp.eq.s32.totalorder %s23, 1
      %p36 = por %p34, %p35
      %p37 = scmp.ne.s32.totalorder %s28, %s29
      %p38 = scmp.eq.s32.totalorder %s23, 0
      %p39 = por %p37, %p38
      %p40 = scmp.ne.s32.totalorder %s28, %s29
      %p41 = scmp.eq.s32.totalorder %s24, 1
      %p42 = por %p40, %p41
      %p44 = scmp.ne.s32.totalorder %s29, %s43
      %p45 = scmp.eq.s32.totalorder %s24, 0
      %p46 = por %p44, %p45
      %s47 = ssub.s32 %s18, %s25
      %p48 = scmp.eq.s32.totalorder %s47, 0
      %s50 = sadd.s32 %s49, 1
      %s51 = scalar_select %p48, %s49, %s50
      %p54 = pneg %p48
      %p55 = scmp.eq.s32.totalorder %s18, 1
      %p56 = por %p54, %p55
      %p57 = scmp.ne.s32.totalorder %s49, %s52
      %p58 = scmp.eq.s32.totalorder %s18, 0
      %p59 = por %p57, %p58
      %p60 = scmp.ne.s32.totalorder %s49, %s52
      %p61 = scmp.eq.s32.totalorder %s23, 1
      %p62 = por %p60, %p61
      %p63 = scmp.ne.s32.totalorder %s52, %s53
      %p64 = scmp.eq.s32.totalorder %s23, 0
      %p65 = por %p63, %p64
      %p66 = scmp.ne.s32.totalorder %s52, %s53
      %p67 = scmp.eq.s32.totalorder %s24, 1
      %p68 = por %p66, %p67
      %p70 = scmp.ne.s32.totalorder %s53, %s69
      %p71 = scmp.eq.s32.totalorder %s24, 0
      %p72 = por %p70, %p71
      %s74 = sadd.s32 %s73, 1
      %p77 = scmp.eq.s32.totalorder %s18, 1
      %p78 = scmp.ne.s32.totalorder %s73, %s75
      %p79 = scmp.eq.s32.totalorder %s18, 0
      %p80 = por %p78, %p79
      %p81 = scmp.ne.s32.totalorder %s73, %s75
      %p82 = scmp.eq.s32.totalorder %s23, 1
      %p83 = por %p81, %p82
      %p84 = scmp.ne.s32.totalorder %s75, %s76
      %p85 = scmp.eq.s32.totalorder %s23, 0
      %p86 = por %p84, %p85
      %p87 = scmp.ne.s32.totalorder %s75, %s76
      %p88 = scmp.eq.s32.totalorder %s24, 1
      %p89 = por %p87, %p88
      %p91 = scmp.ne.s32.totalorder %s76, %s90
      %p92 = scmp.eq.s32.totalorder %s24, 0
      %p93 = por %p91, %p92
      %s95 = sadd.s32 %s94, 1
      %p98 = scmp.eq.s32.totalorder %s18, 1
      %p99 = scmp.ne.s32.totalorder %s94, %s96
      %p100 = scmp.eq.s32.totalorder %s18, 0
      %p101 = por %p99, %p100
      %p102 = scmp.ne.s32.totalorder %s94, %s96
      %p103 = scmp.eq.s32.totalorder %s23, 1
      %p104 = por %p102, %p103
      %p105 = scmp.ne.s32.totalorder %s96, %s97
      %p106 = scmp.eq.s32.totalorder %s23, 0
      %p107 = por %p105, %p106
      %p108 = scmp.ne.s32.totalorder %s96, %s97
      %p109 = scmp.eq.s32.totalorder %s24, 1
      %p110 = por %p108, %p109
      %p112 = scmp.ne.s32.totalorder %s97, %s111
      %p113 = scmp.eq.s32.totalorder %s24, 0
      %p114 = por %p112, %p113
      %s116 = sadd.s32 %s115, 1
      %p119 = scmp.eq.s32.totalorder %s18, 1
      %p120 = scmp.ne.s32.totalorder %s115, %s117
      %p121 = scmp.eq.s32.totalorder %s18, 0
      %p122 = por %p120, %p121
      %p123 = scmp.ne.s32.totalorder %s115, %s117
      %p124 = scmp.eq.s32.totalorder %s23, 1
      %p125 = por %p123, %p124
      %p126 = scmp.ne.s32.totalorder %s117, %s118
      %p127 = scmp.eq.s32.totalorder %s23, 0
      %p128 = por %p126, %p127
      %p129 = scmp.ne.s32.totalorder %s117, %s118
      %p130 = scmp.eq.s32.totalorder %s24, 1
      %p131 = por %p129, %p130
      %p133 = scmp.ne.s32.totalorder %s118, %s132
      %p134 = scmp.eq.s32.totalorder %s24, 0
      %p135 = por %p133, %p134
      %s137 = sadd.s32 %s136, 1
      %p140 = scmp.eq.s32.totalorder %s18, 1
      %p141 = scmp.ne.s32.totalorder %s136, %s138
      %p142 = scmp.eq.s32.totalorder %s18, 0
      %p143 = por %p141, %p142
      %p144 = scmp.ne.s32.totalorder %s136, %s138
      %p145 = scmp.eq.s32.totalorder %s23, 1
      %p146 = por %p144, %p145
      %p147 = scmp.ne.s32.totalorder %s138, %s139
      %p148 = scmp.eq.s32.totalorder %s23, 0
      %p149 = por %p147, %p148
      %p150 = scmp.ne.s32.totalorder %s138, %s139
      %p151 = scmp.eq.s32.totalorder %s24, 1
      %p152 = por %p150, %p151
      %p154 = scmp.ne.s32.totalorder %s139, %s153
      %p155 = scmp.eq.s32.totalorder %s24, 0
      %p156 = por %p154, %p155
      %s157 = ssub.s32 %s18, %s25
      %p158 = scmp.eq.s32.totalorder %s157, 0
      %s160 = sadd.s32 %s159, 1
      %s161 = scalar_select %p158, %s159, %s160
      %p164 = pneg %p158
      %p165 = scmp.eq.s32.totalorder %s18, 1
      %p166 = por %p164, %p165
      %p167 = scmp.ne.s32.totalorder %s159, %s162
      %p168 = scmp.eq.s32.totalorder %s18, 0
      %p169 = por %p167, %p168
      %p170 = scmp.ne.s32.totalorder %s159, %s162
      %p171 = scmp.eq.s32.totalorder %s23, 1
      %p172 = por %p170, %p171
      %p173 = scmp.ne.s32.totalorder %s162, %s163
      %p174 = scmp.eq.s32.totalorder %s23, 0
      %p175 = por %p173, %p174
      %p176 = scmp.ne.s32.totalorder %s162, %s163
      %p177 = scmp.eq.s32.totalorder %s24, 1
      %p178 = por %p176, %p177
      %p180 = scmp.ne.s32.totalorder %s163, %s179
      %p181 = scmp.eq.s32.totalorder %s24, 0
      %p182 = por %p180, %p181
      %p183 = scmp.le.s32.totalorder 1, %s18
      %p184 = scmp.lt.s32.totalorder %s18, 3
      %p185 = pnand %p183, %p184
      %p186 = pneg %p185
      // Predicated region
      $region9: #{tpu_custom_call.1} parent=5 // pred_check
        _
      $region10: #{tpu_custom_call.1} parent=5 // pred_check_branch
        %188 = sbr.rel (%p185) target = $region12
      $region11: #{tpu_custom_call.1} parent=5 // pred_region
        %s189 = ssub.s32 %s18, 1
        // Predicated region
        $region13: #{tpu_custom_call.1} parent=11 // pred_check
          %p190 = pneg %p39
        $region14: #{tpu_custom_call.1} parent=11 // pred_check_branch
          %192 = sbr.rel (%p190) target = $region16
        $region15: #{tpu_custom_call.1} parent=11 // pred_region
          _
        $region16: #{tpu_custom_call.1} parent=11 // pred_fallthru
          _
        // Predicated region
        $region17: #{tpu_custom_call.1} parent=11 // pred_check
          %p193 = pneg %p86
        $region18: #{tpu_custom_call.1} parent=11 // pred_check_branch
          %195 = sbr.rel (%p193) target = $region20
        $region19: #{tpu_custom_call.1} parent=11 // pred_region
          _
        $region20: #{tpu_custom_call.1} parent=11 // pred_fallthru
          _
        // Predicated region
        $region21: #{tpu_custom_call.1} parent=11 // pred_check
          %p196 = pneg %p107
        $region22: #{tpu_custom_call.1} parent=11 // pred_check_branch
          %198 = sbr.rel (%p196) target = $region24
        $region23: #{tpu_custom_call.1} parent=11 // pred_region
          _
        $region24: #{tpu_custom_call.1} parent=11 // pred_fallthru
          _
        // Predicated region
        $region25: #{tpu_custom_call.1} parent=11 // pred_check
          %p199 = pneg %p128
        $region26: #{tpu_custom_call.1} parent=11 // pred_check_branch
          %201 = sbr.rel (%p199) target = $region28
        $region27: #{tpu_custom_call.1} parent=11 // pred_region
          _
        $region28: #{tpu_custom_call.1} parent=11 // pred_fallthru
          _
        // Predicated region
        $region29: #{tpu_custom_call.1} parent=11 // pred_check
          %p202 = pneg %p149
        $region30: #{tpu_custom_call.1} parent=11 // pred_check_branch
          %204 = sbr.rel (%p202) target = $region32
        $region31: #{tpu_custom_call.1} parent=11 // pred_region
          _
        $region32: #{tpu_custom_call.1} parent=11 // pred_fallthru
          _
      $region12: #{tpu_custom_call.1} parent=5 // pred_fallthru
        _
      %p205 = scmp.lt.s32.totalorder %s18, 2
      // Predicated region
      $region33: #{tpu_custom_call.1} parent=5 // pred_check
        %p206 = pneg %p205
      $region34: #{tpu_custom_call.1} parent=5 // pred_check_branch
        %208 = sbr.rel (%p206) target = $region36
      $region35: #{tpu_custom_call.1} parent=5 // pred_region
        // Predicated region
        $region37: #{tpu_custom_call.1} parent=35 // pred_check
          %p209 = pneg %p59
        $region38: #{tpu_custom_call.1} parent=35 // pred_check_branch
          %211 = sbr.rel (%p209) target = $region40
        $region39: #{tpu_custom_call.1} parent=35 // pred_region
          %s212 = sand.u32 %s49, 1
          %s213 = scalar_lea.sflag [#allocation3], %s212
          %s214 = sand.u32 %s49, 1
          %s215 = smul.addr %s214, 32
          %s216 = scalar_lea.vmem [#allocation2], %s215
          %s217 = smul.u32 2, %s18
          %s219 = ssub.s32 512, 512
          %220 = vsyncadd %s213, %s219
          %s221 = smul.addr %s217, 4
          %s222 = smul.addr %s221, 64
          %s223 = scalar_lea.hbm %s1, %s222
          %s224 = sshll.u32 %s216, 4
          %s225 = int_to_ptr.vmem [resolvable:$true] %s224
          %230 = dma.hbm_to_vmem [thread:$0]  %s223, 512, %s225, %s213, 128, 128, 8
        $region40: #{tpu_custom_call.1} parent=35 // pred_fallthru
          _
      $region36: #{tpu_custom_call.1} parent=5 // pred_fallthru
        _
      %p231 = scmp.le.s32.totalorder 1, %s18
      %p232 = scmp.lt.s32.totalorder %s18, 3
      %p233 = pnand %p231, %p232
      %p234 = pneg %p233
      // Predicated region
      $region41: #{tpu_custom_call.1} parent=5 // pred_check
        _
      $region42: #{tpu_custom_call.1} parent=5 // pred_check_branch
        %236 = sbr.rel (%p233) target = $region44
      $region43: #{tpu_custom_call.1} parent=5 // pred_region
        %s237 = ssub.s32 %s18, 1
        %s238 = sand.u32 %s52, 1
        %s239 = scalar_lea.sflag [#allocation3], %s238
        %s240 = sand.u32 %s52, 1
        %s241 = smul.addr %s240, 32
        %s242 = scalar_lea.vmem [#allocation2], %s241
        // Predicated region
        $region45: #{tpu_custom_call.1} parent=43 // pred_check
          %p243 = pneg %p65
        $region46: #{tpu_custom_call.1} parent=43 // pred_check_branch
          %245 = sbr.rel (%p243) target = $region48
        $region47: #{tpu_custom_call.1} parent=43 // pred_region
          %246 = dma.done %s239, 512
        $region48: #{tpu_custom_call.1} parent=43 // pred_fallthru
          _
        %p247 = pneg %p39
        %p248 = pneg %p36
        %s249 = sand.u32 %s52, 1
        %s250 = scalar_lea.sflag [#allocation3], %s249
        %s251 = sand.u32 %s52, 1
        %s252 = smul.addr %s251, 32
        %s253 = scalar_lea.vmem [#allocation2], %s252
        %p254 = pneg %p65
        %p255 = pneg %p62
        %p256 = pneg %p86
        %p257 = pneg %p83
        %p258 = pneg %p107
        %p259 = pneg %p104
        %p260 = pneg %p128
        %p261 = pneg %p125
        %p262 = pneg %p149
        %p263 = pneg %p146
        %p264 = pneg %p175
        %p265 = pneg %p172
        %s266 = sand.u32 %s162, 1
        %s267 = scalar_lea.sflag [#allocation4], %s266
        %s268 = sand.u32 %s162, 1
        %s269 = smul.addr %s268, 32
        %s270 = scalar_lea.vmem [#allocation5], %s269
        %s271 = smul.u32 2, %s23
        %s272 = smul.u32 2, %s23
        %v274 = vld [vmem:[%s2] sm:$0xf]
        %v275 = vld [vmem:[%s4] sm:$0xf]
        %v276 = vld [vmem:[%s4 + $0x4] sm:$0xf]
        %v277 = vld [vmem:[%s3] sm:$0xff]
        %v278 = vld [vmem:[%s5] sm:$0xff]
        %v279 = vld [vmem:[%s5 + $0x8] sm:$0xff]
        %v280 = vld [vmem:[%s0] sm:$0x3]
        %v281 = vld [vmem:[%s242] sm:$0xff]
        %v282 = vld [vmem:[%s242 + $0x8] sm:$0xff]
        %284 = vset.pattern.permute.xlu0 0
        %285 = vperm.xlu0 %284, %v277
        %v286 = vpop.permute.xlu0 %285
        %v290 = vunpack.c.l.b16 %v281
        %v291 = vunpack.c.h.b16 %v281
        %v292 = vunpack.c.l.b16 %v282
        %v293 = vunpack.c.h.b16 %v282
        %v294 = vpack.c.b16 %v292, %v290
        %v295 = vpack.c.b16 %v293, %v291
        %vm298 = vcmask 130048
        %v300 = vsel %vm298, %v274, 0
        %302 = vmatprep.subr.bf16.mxu0 %v295
        %303 = vmatpush1.bf16.msra.mxu0 %v294
        %304 = vmatprep.subr.bf16.mxu0 0
        %305 = vmatpush1.bf16.msra.mxu0 0
        %306 = vmatprep.subr.bf16.mxu0 0
        %307 = vmatpush1.bf16.msra.mxu0 0
        %308 = vmatprep.subr.bf16.mxu0 0
        %309 = vmatpush1.bf16.msra.mxu0 0
        %310 = vmatprep.subr.bf16.mxu0 0
        %311 = vmatpush1.bf16.msra.mxu0 0
        %312 = vmatprep.subr.bf16.mxu0 0
        %313 = vmatpush1.bf16.msra.mxu0 0
        %314 = vmatprep.subr.bf16.mxu0 0
        %315 = vmatpush1.bf16.msra.mxu0 0
        %316 = vmatprep.subr.bf16.mxu0 0
        %317 = vmatpush1.bf16.msra.mxu0 0
        %318 = vmatprep.subr.bf16.mxu0 0
        %319 = vmatpush1.bf16.msra.mxu0 0
        %320 = vmatprep.subr.bf16.mxu0 0
        %321 = vmatpush1.bf16.msra.mxu0 0
        %322 = vmatprep.subr.bf16.mxu0 0
        %323 = vmatpush1.bf16.msra.mxu0 0
        %324 = vmatprep.subr.bf16.mxu0 0
        %325 = vmatpush1.bf16.msra.mxu0 0
        %326 = vmatprep.subr.bf16.mxu0 0
        %327 = vmatpush1.bf16.msra.mxu0 0
        %328 = vmatprep.subr.bf16.mxu0 0
        %329 = vmatpush1.bf16.msra.mxu0 0
        %330 = vmatprep.subr.bf16.mxu0 0
        %331 = vmatpush1.bf16.msra.mxu0 0
        %332 = vmatprep.subr.bf16.mxu0 0
        %333 = vmatpush1.bf16.msra.mxu0 0
        %334 = vmatprep.mubr.bf16.mxu0 0
        %335 = vmatmul.mubr.bf16.gmra.mrb[0].mxu0 %v300
        %v336 = vpop.f32.mrb[0].mxu0
        %v337 = vadd.f32 %v286, %v336
        %v338 = vpop.f32.mrb[0].mxu0
        %v339 = vadd.f32 %v286, %v338
        %v340 = vpop.f32.mrb[0].mxu0
        %v341 = vpop.f32.mrb[0].mxu0
        %342 = vdwg.mxu0
        %v343 = vsub.f32 0.0, %v337
        %v344 = vsub.f32 0.0, %v339
        %v345 = vmul.f32 %v343, 1.442695
        %v346 = vpow.pop %v345
        %v347 = vmul.f32 %v344, 1.442695
        %v348 = vpow.pop %v347
        %v349 = vadd.f32 %v346, 1.0
        %v350 = vadd.f32 %v348, 1.0
        %v351 = vrcp.pop %v349
        %v352 = vrcp.pop %v350
        %v353 = vmul.f32 %v337, %v351
        %v354 = vmul.f32 %v339, %v352
        %v355 = vpack.c.bf16 %v353, %v353
        %v356 = vpack.c.bf16 %v354, %v354
        %v359 = vunpack.c.l.s4 1966171168
        %v360 = vunpack.c.0.s8 %v359
        %v361 = vlaneseq
        %v362 = vshrl.u32 %v361, 7
        %v363 = vsub.s32 %v360, %v362
        %v364 = vrot.slane %v280, %v363
        %v365 = vcombine.high %v364, %v364
        %v367 = vunpack.c.l.s4 1966171168
        %v368 = vunpack.c.0.s8 %v367
        %v369 = vlaneseq
        %v370 = vshrl.u32 %v369, 7
        %v371 = vsub.s32 %v368, %v370
        %v372 = vrot.slane %v364, %v371
        %v374 = vunpack.c.l.s4 1966171168
        %v375 = vunpack.c.0.s8 %v374
        %v376 = vlaneseq
        %v377 = vshrl.u32 %v376, 7
        %v378 = vsub.s32 %v375, %v377
        %v379 = vrot.slane %v365, %v378
        %v381 = vpack.i.b16 %v372, %v372
        %v383 = vlaneseq
        %v384 = vshrl.u32 %v383, 7
        %v385 = vsub.s32 0, %v384
        %v386 = vrot.slane %v381, %v385
        %v388 = vpack.i.b16 %v379, %v379
        %v390 = vlaneseq
        %v391 = vshrl.u32 %v390, 7
        %v392 = vsub.s32 0, %v391
        %v393 = vrot.slane %v388, %v392
        %v394 = vmul.bf16 %v355, %v386
        %v395 = vmul.bf16 %v356, %v393
        %v396 = vshrl.u32 %v372, 16
        %v397 = vpack.i.b16 %v396, %v396
        %v399 = vlaneseq
        %v400 = vshrl.u32 %v399, 7
        %v401 = vsub.s32 0, %v400
        %v402 = vrot.slane %v397, %v401
        %v403 = vshrl.u32 %v379, 16
        %v404 = vpack.i.b16 %v403, %v403
        %v406 = vlaneseq
        %v407 = vshrl.u32 %v406, 7
        %v408 = vsub.s32 0, %v407
        %v409 = vrot.slane %v404, %v408
        %v410 = vmul.bf16 %v355, %v402
        %v411 = vmul.bf16 %v356, %v409
        %414 = vrot.lane.b32.xlu0 %v410, 17
        %v415 = vpop.permute.xlu0 %414
        %416 = vrot.lane.b32.xlu0 %v411, 17
        %v417 = vpop.permute.xlu0 %416
        %vm418 = vcmask 138240
        %v419 = vsel %vm418, %v415, %v417
        %vm420 = vcmask 138240
        %v423 = vsel %vm420, 0, %v415
        %426 = vrot.lane.b32.xlu0 %v355, 16
        %v427 = vpop.permute.xlu0 %426
        %428 = vrot.lane.b32.xlu0 %v356, 16
        %v429 = vpop.permute.xlu0 %428
        %vm430 = vcmask 130048
        %v431 = vsel %vm430, %v427, %v429
        %v433 = vsel %vm298, 0, %v427
        %436 = vrot.lane.b32.xlu0 %v394, 15
        %v437 = vpop.permute.xlu0 %436
        %438 = vrot.lane.b32.xlu0 %v395, 15
        %v439 = vpop.permute.xlu0 %438
        %vm440 = vcmask 121856
        %v441 = vsel %vm440, %v437, %v439
        %vm442 = vcmask 121856
        %v444 = vsel %vm442, 0, %v437
        %445 = vrot.lane.b32.xlu0 %v410, 1
        %v446 = vpop.permute.xlu0 %445
        %447 = vrot.lane.b32.xlu0 %v411, 1
        %v448 = vpop.permute.xlu0 %447
        %vm449 = vcmask 7168
        %v450 = vsel %vm449, %v446, %v448
        %vm451 = vcmask 7168
        %v453 = vsel %vm451, 0, %v446
        %454 = vrot.lane.b32.xlu0 %v394, 127
        %v455 = vpop.permute.xlu0 %454
        %456 = vrot.lane.b32.xlu0 %v395, 127
        %v457 = vpop.permute.xlu0 %456
        %vm458 = vcmask 1039360
        %v459 = vsel %vm458, %v455, %v457
        %vm460 = vcmask 1039360
        %v462 = vsel %vm460, %v457, 0
        %463 = vrot.lane.b32.xlu0 %v410, 113
        %v464 = vpop.permute.xlu0 %463
        %465 = vrot.lane.b32.xlu0 %v411, 113
        %v466 = vpop.permute.xlu0 %465
        %vm467 = vcmask 924672
        %v468 = vsel %vm467, %v464, %v466
        %vm469 = vcmask 924672
        %v471 = vsel %vm469, %v466, 0
        %472 = vrot.lane.b32.xlu0 %v355, 112
        %v473 = vpop.permute.xlu0 %472
        %474 = vrot.lane.b32.xlu0 %v356, 112
        %v475 = vpop.permute.xlu0 %474
        %vm476 = vcmask 916480
        %v477 = vsel %vm476, %v473, %v475
        %vm478 = vcmask 916480
        %v480 = vsel %vm478, %v475, 0
        %481 = vrot.lane.b32.xlu0 %v394, 111
        %v482 = vpop.permute.xlu0 %481
        %483 = vrot.lane.b32.xlu0 %v395, 111
        %v484 = vpop.permute.xlu0 %483
        %vm485 = vcmask 908288
        %v486 = vsel %vm485, %v482, %v484
        %vm487 = vcmask 908288
        %v489 = vsel %vm487, %v484, 0
        %v491 = vrot.slane %v433, 4
        %v492 = vrot.slane %v431, 4
        %v494 = vrot.slane %v453, 4
        %v495 = vrot.slane %v450, 4
        %v497 = vrot.slane %v459, 4
        %v498 = vrot.slane %v462, 4
        %v500 = vrot.slane %v477, 4
        %v501 = vrot.slane %v480, 4
        %vm502 = vcmask 1043456
        %v504 = vsel %vm502, %v423, %v491
        %v508 = vsel %vm502, %v419, %v492
        %v511 = vsel %vm502, %v444, %v494
        %v515 = vsel %vm502, %v441, %v495
        %v519 = vsel %vm502, %v355, %v497
        %v523 = vsel %vm502, %v356, %v498
        %v527 = vsel %vm502, %v468, %v500
        %v530 = vsel %vm502, %v471, %v501
        %533 = vset.pattern.permute.xlu0 0
        %534 = vperm.xlu0 %533, %v278
        %v535 = vpop.permute.xlu0 %534
        %538 = vset.pattern.permute.xlu0 0
        %539 = vperm.xlu0 %538, %v279
        %v540 = vpop.permute.xlu0 %539
        %v544 = vunpack.c.l.b16 %v275
        %v545 = vunpack.c.l.b16 %v276
        %v546 = vpack.c.b16 %v545, %v544
        %vm547 = vcmask 588800
        %v549 = vsel %vm547, %v546, 0
        %v552 = vsel %vm502, %v486, 0
        %v554 = vsel %vm502, %v489, 0
        %556 = vmatprep.subr.bf16.mxu0 %v508
        %557 = vmatpush1.bf16.msra.mxu0 %v504
        %558 = vmatprep.subr.bf16.mxu0 %v515
        %559 = vmatpush1.bf16.msra.mxu0 %v511
        %560 = vmatprep.subr.bf16.mxu0 %v523
        %561 = vmatpush1.bf16.msra.mxu0 %v519
        %562 = vmatprep.subr.bf16.mxu0 %v530
        %563 = vmatpush1.bf16.msra.mxu0 %v527
        %564 = vmatprep.subr.bf16.mxu0 %v554
        %565 = vmatpush1.bf16.msra.mxu0 %v552
        %566 = vmatprep.subr.bf16.mxu0 0
        %567 = vmatpush1.bf16.msra.mxu0 0
        %568 = vmatprep.subr.bf16.mxu0 0
        %569 = vmatpush1.bf16.msra.mxu0 0
        %570 = vmatprep.subr.bf16.mxu0 0
        %571 = vmatpush1.bf16.msra.mxu0 0
        %572 = vmatprep.subr.bf16.mxu0 0
        %573 = vmatpush1.bf16.msra.mxu0 0
        %574 = vmatprep.subr.bf16.mxu0 0
        %575 = vmatpush1.bf16.msra.mxu0 0
        %576 = vmatprep.subr.bf16.mxu0 0
        %577 = vmatpush1.bf16.msra.mxu0 0
        %578 = vmatprep.subr.bf16.mxu0 0
        %579 = vmatpush1.bf16.msra.mxu0 0
        %580 = vmatprep.subr.bf16.mxu0 0
        %581 = vmatpush1.bf16.msra.mxu0 0
        %582 = vmatprep.subr.bf16.mxu0 0
        %583 = vmatpush1.bf16.msra.mxu0 0
        %584 = vmatprep.subr.bf16.mxu0 0
        %585 = vmatpush1.bf16.msra.mxu0 0
        %586 = vmatprep.subr.bf16.mxu0 0
        %587 = vmatpush1.bf16.msra.mxu0 0
        %588 = vmatprep.mubr.bf16.mxu0 0
        %589 = vmatmul.mubr.bf16.gmra.mrb[0].mxu0 %v549
        %v590 = vpop.f32.mrb[0].mxu0
        %v591 = vadd.f32 %v535, %v590
        %v592 = vpop.f32.mrb[0].mxu0
        %v593 = vadd.f32 %v535, %v592
        %v594 = vpop.f32.mrb[0].mxu0
        %v595 = vadd.f32 %v540, %v594
        %v596 = vpop.f32.mrb[0].mxu0
        %v597 = vadd.f32 %v540, %v596
        %598 = vdwg.mxu0
        %v599 = vsub.f32 0.0, %v591
        %v600 = vsub.f32 0.0, %v593
        %v601 = vsub.f32 0.0, %v595
        %v602 = vsub.f32 0.0, %v597
        %v603 = vmul.f32 %v599, 1.442695
        %v604 = vpow.pop %v603
        %v605 = vmul.f32 %v600, 1.442695
        %v606 = vpow.pop %v605
        %v607 = vmul.f32 %v601, 1.442695
        %v608 = vpow.pop %v607
        %v609 = vmul.f32 %v602, 1.442695
        %v610 = vpow.pop %v609
        %v611 = vadd.f32 %v604, 1.0
        %v612 = vadd.f32 %v606, 1.0
        %v613 = vadd.f32 %v608, 1.0
        %v614 = vadd.f32 %v610, 1.0
        %v615 = vrcp.pop %v611
        %v616 = vrcp.pop %v612
        %v617 = vrcp.pop %v613
        %v618 = vrcp.pop %v614
        %v619 = vmul.f32 %v591, %v615
        %v620 = vmul.f32 %v593, %v616
        %v621 = vmul.f32 %v595, %v617
        %v622 = vmul.f32 %v597, %v618
        %v623 = vunpack.c.l.bf16 %v281
        %v624 = vunpack.c.h.bf16 %v281
        %v625 = vunpack.c.l.bf16 %v282
        %v626 = vunpack.c.h.bf16 %v282
        %v627 = vadd.f32 %v619, %v623
        %v628 = vadd.f32 %v620, %v624
        %v629 = vadd.f32 %v621, %v625
        %v630 = vadd.f32 %v622, %v626
        %v631 = vpack.c.bf16 %v629, %v627
        %v632 = vpack.c.bf16 %v630, %v628
        %v635 = vunpack.c.l.b16 %v631
        %v636 = vunpack.c.l.b16 %v632
        %v637 = vunpack.c.h.b16 %v631
        %v638 = vunpack.c.h.b16 %v632
        %v639 = vpack.c.b16 %v636, %v635
        %v640 = vpack.c.b16 %v638, %v637
        %643 = vst [vmem:[%s270] sm:$0xff] %v639
        %644 = vst [vmem:[%s270 + $0x8] sm:$0xff] %v640
        %s645 = scalar_lea.vmem %s242, 16 [#allocation2]
        %v646 = vld [vmem:[%s645] sm:$0xff]
        %v647 = vld [vmem:[%s645 + $0x8] sm:$0xff]
        %v650 = vunpack.c.l.b16 %v646
        %v651 = vunpack.c.h.b16 %v646
        %v652 = vunpack.c.l.b16 %v647
        %v653 = vunpack.c.h.b16 %v647
        %v654 = vpack.c.b16 %v652, %v650
        %v655 = vpack.c.b16 %v653, %v651
        %658 = vmatprep.subr.bf16.mxu0 %v655
        %659 = vmatpush1.bf16.msra.mxu0 %v654
        %660 = vmatprep.subr.bf16.mxu0 0
        %661 = vmatpush1.bf16.msra.mxu0 0
        %662 = vmatprep.subr.bf16.mxu0 0
        %663 = vmatpush1.bf16.msra.mxu0 0
        %664 = vmatprep.subr.bf16.mxu0 0
        %665 = vmatpush1.bf16.msra.mxu0 0
        %666 = vmatprep.subr.bf16.mxu0 0
        %667 = vmatpush1.bf16.msra.mxu0 0
        %668 = vmatprep.subr.bf16.mxu0 0
        %669 = vmatpush1.bf16.msra.mxu0 0
        %670 = vmatprep.subr.bf16.mxu0 0
        %671 = vmatpush1.bf16.msra.mxu0 0
        %672 = vmatprep.subr.bf16.mxu0 0
        %673 = vmatpush1.bf16.msra.mxu0 0
        %674 = vmatprep.subr.bf16.mxu0 0
        %675 = vmatpush1.bf16.msra.mxu0 0
        %676 = vmatprep.subr.bf16.mxu0 0
        %677 = vmatpush1.bf16.msra.mxu0 0
        %678 = vmatprep.subr.bf16.mxu0 0
        %679 = vmatpush1.bf16.msra.mxu0 0
        %680 = vmatprep.subr.bf16.mxu0 0
        %681 = vmatpush1.bf16.msra.mxu0 0
        %682 = vmatprep.subr.bf16.mxu0 0
        %683 = vmatpush1.bf16.msra.mxu0 0
        %684 = vmatprep.subr.bf16.mxu0 0
        %685 = vmatpush1.bf16.msra.mxu0 0
        %686 = vmatprep.subr.bf16.mxu0 0
        %687 = vmatpush1.bf16.msra.mxu0 0
        %688 = vmatprep.subr.bf16.mxu0 0
        %689 = vmatpush1.bf16.msra.mxu0 0
        %690 = vmatprep.mubr.bf16.mxu0 0
        %691 = vmatmul.mubr.bf16.gmra.mrb[0].mxu0 %v300
        %v692 = vpop.f32.mrb[0].mxu0
        %v693 = vadd.f32 %v286, %v692
        %v694 = vpop.f32.mrb[0].mxu0
        %v695 = vadd.f32 %v286, %v694
        %v696 = vpop.f32.mrb[0].mxu0
        %v697 = vpop.f32.mrb[0].mxu0
        %698 = vdwg.mxu0
        %v699 = vsub.f32 0.0, %v693
        %v700 = vsub.f32 0.0, %v695
        %v701 = vmul.f32 %v699, 1.442695
        %v702 = vpow.pop %v701
        %v703 = vmul.f32 %v700, 1.442695
        %v704 = vpow.pop %v703
        %v705 = vadd.f32 %v702, 1.0
        %v706 = vadd.f32 %v704, 1.0
        %v707 = vrcp.pop %v705
        %v708 = vrcp.pop %v706
        %v709 = vmul.f32 %v693, %v707
        %v710 = vmul.f32 %v695, %v708
        %v711 = vpack.c.bf16 %v709, %v709
        %v712 = vpack.c.bf16 %v710, %v710
        %v713 = vmul.bf16 %v711, %v386
        %v714 = vmul.bf16 %v712, %v393
        %v715 = vmul.bf16 %v711, %v402
        %v716 = vmul.bf16 %v712, %v409
        %719 = vrot.lane.b32.xlu0 %v715, 17
        %v720 = vpop.permute.xlu0 %719
        %721 = vrot.lane.b32.xlu0 %v716, 17
        %v722 = vpop.permute.xlu0 %721
        %v723 = vsel %vm418, %v720, %v722
        %v725 = vsel %vm420, 0, %v720
        %728 = vrot.lane.b32.xlu0 %v711, 16
        %v729 = vpop.permute.xlu0 %728
        %730 = vrot.lane.b32.xlu0 %v712, 16
        %v731 = vpop.permute.xlu0 %730
        %v732 = vsel %vm430, %v729, %v731
        %v734 = vsel %vm298, 0, %v729
        %737 = vrot.lane.b32.xlu0 %v713, 15
        %v738 = vpop.permute.xlu0 %737
        %739 = vrot.lane.b32.xlu0 %v714, 15
        %v740 = vpop.permute.xlu0 %739
        %v741 = vsel %vm440, %v738, %v740
        %v743 = vsel %vm442, 0, %v738
        %744 = vrot.lane.b32.xlu0 %v715, 1
        %v745 = vpop.permute.xlu0 %744
        %746 = vrot.lane.b32.xlu0 %v716, 1
        %v747 = vpop.permute.xlu0 %746
        %v748 = vsel %vm449, %v745, %v747
        %v750 = vsel %vm451, 0, %v745
        %751 = vrot.lane.b32.xlu0 %v713, 127
        %v752 = vpop.permute.xlu0 %751
        %753 = vrot.lane.b32.xlu0 %v714, 127
        %v754 = vpop.permute.xlu0 %753
        %v755 = vsel %vm458, %v752, %v754
        %v757 = vsel %vm460, %v754, 0
        %758 = vrot.lane.b32.xlu0 %v715, 113
        %v759 = vpop.permute.xlu0 %758
        %760 = vrot.lane.b32.xlu0 %v716, 113
        %v761 = vpop.permute.xlu0 %760
        %v762 = vsel %vm467, %v759, %v761
        %v764 = vsel %vm469, %v761, 0
        %765 = vrot.lane.b32.xlu0 %v711, 112
        %v766 = vpop.permute.xlu0 %765
        %767 = vrot.lane.b32.xlu0 %v712, 112
        %v768 = vpop.permute.xlu0 %767
        %v769 = vsel %vm476, %v766, %v768
        %v771 = vsel %vm478, %v768, 0
        %772 = vrot.lane.b32.xlu0 %v713, 111
        %v773 = vpop.permute.xlu0 %772
        %774 = vrot.lane.b32.xlu0 %v714, 111
        %v775 = vpop.permute.xlu0 %774
        %v776 = vsel %vm485, %v773, %v775
        %v778 = vsel %vm487, %v775, 0
        %v780 = vrot.slane %v734, 4
        %v781 = vrot.slane %v732, 4
        %v783 = vrot.slane %v750, 4
        %v784 = vrot.slane %v748, 4
        %v786 = vrot.slane %v755, 4
        %v787 = vrot.slane %v757, 4
        %v789 = vrot.slane %v769, 4
        %v790 = vrot.slane %v771, 4
        %v792 = vsel %vm502, %v725, %v780
        %v796 = vsel %vm502, %v723, %v781
        %v799 = vsel %vm502, %v743, %v783
        %v803 = vsel %vm502, %v741, %v784
        %v807 = vsel %vm502, %v711, %v786
        %v811 = vsel %vm502, %v712, %v787
        %v815 = vsel %vm502, %v762, %v789
        %v818 = vsel %vm502, %v764, %v790
        %v821 = vsel %vm502, %v776, 0
        %v823 = vsel %vm502, %v778, 0
        %825 = vmatprep.subr.bf16.mxu0 %v796
        %826 = vmatpush1.bf16.msra.mxu0 %v792
        %827 = vmatprep.subr.bf16.mxu0 %v803
        %828 = vmatpush1.bf16.msra.mxu0 %v799
        %829 = vmatprep.subr.bf16.mxu0 %v811
        %830 = vmatpush1.bf16.msra.mxu0 %v807
        %831 = vmatprep.subr.bf16.mxu0 %v818
        %832 = vmatpush1.bf16.msra.mxu0 %v815
        %833 = vmatprep.subr.bf16.mxu0 %v823
        %834 = vmatpush1.bf16.msra.mxu0 %v821
        %835 = vmatprep.subr.bf16.mxu0 0
        %836 = vmatpush1.bf16.msra.mxu0 0
        %837 = vmatprep.subr.bf16.mxu0 0
        %838 = vmatpush1.bf16.msra.mxu0 0
        %839 = vmatprep.subr.bf16.mxu0 0
        %840 = vmatpush1.bf16.msra.mxu0 0
        %841 = vmatprep.subr.bf16.mxu0 0
        %842 = vmatpush1.bf16.msra.mxu0 0
        %843 = vmatprep.subr.bf16.mxu0 0
        %844 = vmatpush1.bf16.msra.mxu0 0
        %845 = vmatprep.subr.bf16.mxu0 0
        %846 = vmatpush1.bf16.msra.mxu0 0
        %847 = vmatprep.subr.bf16.mxu0 0
        %848 = vmatpush1.bf16.msra.mxu0 0
        %849 = vmatprep.subr.bf16.mxu0 0
        %850 = vmatpush1.bf16.msra.mxu0 0
        %851 = vmatprep.subr.bf16.mxu0 0
        %852 = vmatpush1.bf16.msra.mxu0 0
        %853 = vmatprep.subr.bf16.mxu0 0
        %854 = vmatpush1.bf16.msra.mxu0 0
        %855 = vmatprep.subr.bf16.mxu0 0
        %856 = vmatpush1.bf16.msra.mxu0 0
        %857 = vmatprep.mubr.bf16.mxu0 0
        %858 = vmatmul.mubr.bf16.gmra.mrb[0].mxu0 %v549
        %v859 = vpop.f32.mrb[0].mxu0
        %v860 = vadd.f32 %v535, %v859
        %v861 = vpop.f32.mrb[0].mxu0
        %v862 = vadd.f32 %v535, %v861
        %v863 = vpop.f32.mrb[0].mxu0
        %v864 = vadd.f32 %v540, %v863
        %v865 = vpop.f32.mrb[0].mxu0
        %v866 = vadd.f32 %v540, %v865
        %867 = vdwg.mxu0
        %v868 = vsub.f32 0.0, %v860
        %v869 = vsub.f32 0.0, %v862
        %v870 = vsub.f32 0.0, %v864
        %v871 = vsub.f32 0.0, %v866
        %v872 = vmul.f32 %v868, 1.442695
        %v873 = vpow.pop %v872
        %v874 = vmul.f32 %v869, 1.442695
        %v875 = vpow.pop %v874
        %v876 = vmul.f32 %v870, 1.442695
        %v877 = vpow.pop %v876
        %v878 = vmul.f32 %v871, 1.442695
        %v879 = vpow.pop %v878
        %v880 = vadd.f32 %v873, 1.0
        %v881 = vadd.f32 %v875, 1.0
        %v882 = vadd.f32 %v877, 1.0
        %v883 = vadd.f32 %v879, 1.0
        %v884 = vrcp.pop %v880
        %v885 = vrcp.pop %v881
        %v886 = vrcp.pop %v882
        %v887 = vrcp.pop %v883
        %v888 = vmul.f32 %v860, %v884
        %v889 = vmul.f32 %v862, %v885
        %v890 = vmul.f32 %v864, %v886
        %v891 = vmul.f32 %v866, %v887
        %v892 = vunpack.c.l.bf16 %v646
        %v893 = vunpack.c.h.bf16 %v646
        %v894 = vunpack.c.l.bf16 %v647
        %v895 = vunpack.c.h.bf16 %v647
        %v896 = vadd.f32 %v888, %v892
        %v897 = vadd.f32 %v889, %v893
        %v898 = vadd.f32 %v890, %v894
        %v899 = vadd.f32 %v891, %v895
        %v900 = vpack.c.bf16 %v898, %v896
        %v901 = vpack.c.bf16 %v899, %v897
        %v904 = vunpack.c.l.b16 %v900
        %v905 = vunpack.c.l.b16 %v901
        %v906 = vunpack.c.h.b16 %v900
        %v907 = vunpack.c.h.b16 %v901
        %v908 = vpack.c.b16 %v905, %v904
        %v909 = vpack.c.b16 %v907, %v906
        %s912 = scalar_lea.vmem %s270, 16 [#allocation5]
        %913 = vst [vmem:[%s912] sm:$0xff] %v908
        %914 = vst [vmem:[%s912 + $0x8] sm:$0xff] %v909
        %s915 = sand.u32 %s162, 1
        %s916 = scalar_lea.sflag [#allocation4], %s915
        %s917 = sand.u32 %s162, 1
        %s918 = smul.addr %s917, 32
        %s919 = scalar_lea.vmem [#allocation5], %s918
        // Predicated region
        $region49: #{tpu_custom_call.1} parent=43 // pred_check
          %p920 = pneg %p172
        $region50: #{tpu_custom_call.1} parent=43 // pred_check_branch
          %922 = sbr.rel (%p920) target = $region52
        $region51: #{tpu_custom_call.1} parent=43 // pred_region
          %s923 = smul.u32 2, %s23
          %s925 = ssub.s32 512, 512
          %926 = vsyncadd %s916, %s925
          %s927 = smul.addr %s923, 4
          %s928 = smul.addr %s927, 64
          %s929 = scalar_lea.hbm %s6, %s928
          %s930 = sshll.u32 %s919, 4
          %s931 = int_to_ptr.vmem [resolvable:$true] %s930
          %936 = dma.vmem_to_hbm [thread:$0]  %s931, 512, %s929, %s916, 128, 128, 8
        $region52: #{tpu_custom_call.1} parent=43 // pred_fallthru
          _
      $region44: #{tpu_custom_call.1} parent=5 // pred_fallthru
        _
      %p937 = scmp.le.s32.totalorder 2, %s18
      // Predicated region
      $region53: #{tpu_custom_call.1} parent=5 // pred_check
        %p938 = pneg %p937
      $region54: #{tpu_custom_call.1} parent=5 // pred_check_branch
        %940 = sbr.rel (%p938) target = $region56
      $region55: #{tpu_custom_call.1} parent=5 // pred_region
        %s941 = ssub.s32 %s18, 2
        // Predicated region
        $region57: #{tpu_custom_call.1} parent=55 // pred_check
          %p942 = pneg %p178
        $region58: #{tpu_custom_call.1} parent=55 // pred_check_branch
          %944 = sbr.rel (%p942) target = $region60
        $region59: #{tpu_custom_call.1} parent=55 // pred_region
          %s945 = sand.u32 %s163, 1
          %s946 = scalar_lea.sflag [#allocation4], %s945
          %s947 = sand.u32 %s163, 1
          %s948 = smul.addr %s947, 32
          %s949 = scalar_lea.vmem [#allocation5], %s948
          %950 = dma.done %s946, 512
        $region60: #{tpu_custom_call.1} parent=55 // pred_fallthru
          _
      $region56: #{tpu_custom_call.1} parent=5 // pred_fallthru
        _
    $region6: #{tpu_custom_call.1} parent=1 // loop_footer
      %s22 = sadd.s32 1, %s18
    $region7: #{tpu_custom_call.1} parent=1 // loop_footer_branch
      %17 = sbr.rel target = $region3
    $region8: #{tpu_custom_call.1} parent=1 // loop_exit
      _
    %951 = vsyncpa [#allocation3], 1
    %s952 = scalar_lea.sflag [#allocation3], 1
    %953 = vsyncpa %s952, 1
    %954 = vsyncpa [#allocation4], 1
    %s955 = scalar_lea.sflag [#allocation4], 1
    %956 = vsyncpa %s955, 1

</llo_original>
